<compile_context>
chip_gen: v5e
topology: v5e:2x2
jax: 0.10.0
libtpu: 0.0.40
codegen_flags: <defaults>
</compile_context>

<pallas_src>
from typing import NamedTuple

import jax
import jax.numpy as jnp
from jax.experimental import pallas as pl
from jax.experimental.pallas import tpu as pltpu


# --------------------------------------------------------------------------
# helpers
# --------------------------------------------------------------------------
def _round_up(x, m):
    return (x + m - 1) // m * m


def _cdiv(a, b):
    return (a + b - 1) // b


def _tpu_kind_and_vmem():
    kind = ""
    try:
        kind = jax.devices()[0].device_kind.lower()
    except Exception:
        pass
    vmem = None
    try:
        vmem = int(pltpu.get_tpu_info().vmem_capacity_bytes)
    except Exception:
        vmem = None
    if not vmem:
        vmem = (64 << 20) if "v7" in kind else (128 << 20)
    return kind, vmem


_TM_MAX = 512  # rows per batch tile at large B (amortizes each w2 slab read)


def _working_set_bytes(TM, Lp, Ep, TN, out_itemsize):
    """Conservative VMEM working-set estimate (double-buffered pipelining)."""
    w1 = 2 * Lp * Ep * 2           # bf16 weight, budgeted as double-buffered
    b1 = 2 * Ep * 4
    x = 2 * TM * Lp * 2            # bf16 batch tile
    w2 = 2 * Ep * TN * 2           # streamed bf16 vocab slab
    b2 = 2 * TN * 4
    logit = 2 * TM * TN * out_itemsize
    embed = 2 * TM * Ep * 4        # resident f32 pre-activation output block
    scratch = TM * Ep * 2          # bf16 tanh(h) scratch
    return w1 + b1 + x + w2 + b2 + logit + embed + scratch


def _choose_tn(Lp, Ep, T1_128, kind, vmem_bytes, out_itemsize):
    """Largest vocab slab that (a) divides the 128-padded vocab exactly and
    (b) keeps the pipelined working set well inside physical VMEM."""
    budget = int(vmem_bytes * 0.6)            # leave headroom for compiler scratch
    tn_cap = 1024 if "v7" in kind else 2048   # v7x: 64 MiB/TC -> smaller slabs
    best, tn = 128, 128
    limit = min(tn_cap, T1_128)
    while tn <= limit:
        if T1_128 % tn == 0 and _working_set_bytes(
                _TM_MAX, Lp, Ep, tn, out_itemsize) <= budget:
            best = tn
        tn += 128
    return best


# --------------------------------------------------------------------------
# one-time weight prep (hoisted out of the forward hot path)
# --------------------------------------------------------------------------
class PreparedDecoder(NamedTuple):
    w1p: jax.Array   # [Lp, Ep] bf16
    b1p: jax.Array   # [1, Ep]  f32
    w2p: jax.Array   # [Ep, T1p] bf16
    b2p: jax.Array   # [1, T1p] f32
    L: int
    E: int
    T1: int
    Lp: int
    Ep: int
    T1p: int
    TN: int
    kind: str
    vmem_bytes: int


def prepare_decoder_params(w1, b1, w2, b2):
    """Pad weights to lane-dense (128-multiple) shapes and cast matmul operands
    to bf16 ONCE.  Cache the result and reuse it across forward calls."""
    L, E = w1.shape
    T1 = w2.shape[1]
    Lp = _round_up(L, 128)
    Ep = _round_up(E, 128)
    T1p = _round_up(T1, 128)          # vocab padded to 128 only; TN divides T1p

    kind, vmem_bytes = _tpu_kind_and_vmem()
    TN = _choose_tn(Lp, Ep, T1p, kind, vmem_bytes, out_itemsize=4)

    w1p = jnp.pad(w1, ((0, Lp - L), (0, Ep - E))).astype(jnp.bfloat16)
    w2p = jnp.pad(w2, ((0, Ep - E), (0, T1p - T1))).astype(jnp.bfloat16)
    b1p = jnp.pad(b1, (0, Ep - E)).reshape(1, Ep).astype(jnp.float32)
    b2p = jnp.pad(b2, (0, T1p - T1)).reshape(1, T1p).astype(jnp.float32)
    return PreparedDecoder(w1p, b1p, w2p, b2p, L, E, T1, Lp, Ep, T1p, TN,
                           kind, vmem_bytes)


# --------------------------------------------------------------------------
# kernel
# --------------------------------------------------------------------------
def decoder_kernel(x_ref, w1_ref, b1_ref, w2_ref, b2_ref,
                   logits_ref, embed_ref, a_ref):
    """One (batch-tile i, vocab-tile j) grid step.

    x:  [TM, Lp] bf16   w1: [Lp, Ep] bf16   b1: [1, Ep] f32
    w2: [Ep, TN] bf16   b2: [1, TN]  f32
    logits: [TM, TN] (input dtype)   embed: [TM, Ep] f32
    a (scratch): [TM, Ep] bf16
    """
    j = pl.program_id(1)

    # linear1 + tanh only once per batch tile; j is the inner, carried axis so
    # the embed output block and the bf16 activation scratch stay resident.
    @pl.when(j == 0)
    def _():
        h = jnp.dot(x_ref[...], w1_ref[...],
                    preferred_element_type=jnp.float32) + b1_ref[...]
        embed_ref[...] = h                        # pre-activation output (f32)
        a_ref[...] = jnp.tanh(h).astype(a_ref.dtype)

    # linear2: one TN-wide slab of w2 per grid step (streams through VMEM).
    logits_ref[...] = (
        jnp.dot(a_ref[...], w2_ref[...],
                preferred_element_type=jnp.float32) + b2_ref[...]
    ).astype(logits_ref.dtype)


# --------------------------------------------------------------------------
# forward
# --------------------------------------------------------------------------
def decoder_forward(x, params: PreparedDecoder):
    """x: [B, L] -> (logits [B, T1] (x.dtype), out_embed [B, E] f32)."""
    B, L = x.shape
    assert L == params.L, "input feature dim mismatch"
    kind = params.kind
    Lp, Ep, T1p, TN = params.Lp, params.Ep, params.T1p, params.TN
    out_dtype = x.dtype
    out_itemsize = jnp.dtype(out_dtype).itemsize

    # ---- batch tile (generation-aware, bandwidth-oriented) -----------------
    if B <= 16:
        TM = _round_up(max(B, 1), 16)          # bf16 packs 16 rows / vreg group
    else:
        TM = min(_TM_MAX, _round_up(B, 16))
        # v7x has 2 TensorCores: ensure the parallel batch axis has >= 2 tiles
        # when the batch is big enough for the split to be worthwhile.
        if "v7" in kind and B >= 256 and _cdiv(_round_up(B, 16), TM) == 1:
            TM = _round_up(_cdiv(B, 2), 16)
    # shrink TM if the working set would not fit the VMEM budget (huge E case)
    budget = int(params.vmem_bytes * 0.6)
    while TM > 16 and _working_set_bytes(TM, Lp, Ep, TN, out_itemsize) > budget:
        TM = max(16, _round_up(TM // 2, 16))

    Bp = _round_up(B, TM)

    # ---- per-call input prep (x only; weights are already prepared) --------
    xp = x
    if (Bp, Lp) != (B, L):
        xp = jnp.pad(x, ((0, Bp - B), (0, Lp - L)))
    xp = xp.astype(jnp.bfloat16)

    # ---- explicit VMEM limit from the actual working set -------------------
    ws = _working_set_bytes(TM, Lp, Ep, TN, out_itemsize)
    vmem_limit = int(ws * 1.25) + (8 << 20)
    vmem_limit = min(vmem_limit, params.vmem_bytes - (8 << 20))
    vmem_limit = max(vmem_limit, 16 << 20)

    grid = (Bp // TM, T1p // TN)

    logits_p, embed_p = pl.pallas_call(
        decoder_kernel,
        out_shape=(
            jax.ShapeDtypeStruct((Bp, T1p), out_dtype),    # logits
            jax.ShapeDtypeStruct((Bp, Ep), jnp.float32),   # out_embed (pre-tanh)
        ),
        grid=grid,
        in_specs=[
            pl.BlockSpec((TM, Lp), lambda i, j: (i, 0)),   # x: batch tile
            pl.BlockSpec((Lp, Ep), lambda i, j: (0, 0)),   # w1: VMEM-resident
            pl.BlockSpec((1, Ep), lambda i, j: (0, 0)),    # b1: VMEM-resident
            pl.BlockSpec((Ep, TN), lambda i, j: (0, j)),   # w2: streamed by j
            pl.BlockSpec((1, TN), lambda i, j: (0, j)),    # b2: streamed by j
        ],
        out_specs=(
            pl.BlockSpec((TM, TN), lambda i, j: (i, j)),   # logits tile
            pl.BlockSpec((TM, Ep), lambda i, j: (i, 0)),   # embed (carried over j)
        ),
        scratch_shapes=[pltpu.VMEM((TM, Ep), jnp.bfloat16)],  # tanh(h) in bf16
        compiler_params=pltpu.CompilerParams(
            dimension_semantics=("parallel", "arbitrary"),
            vmem_limit_bytes=vmem_limit),
    )(xp, params.w1p, params.b1p, params.w2p, params.b2p)

    # slice only when padding actually exists (avoids an extra pass otherwise)
    logits = logits_p if (Bp == B and T1p == params.T1) else logits_p[:B, :params.T1]
    embed = embed_p if (Bp == B and Ep == params.E) else embed_p[:B, :params.E]
    return logits, embed


# --------------------------------------------------------------------------
# parameter init (matches the PyTorch module's shapes / init scheme)
# --------------------------------------------------------------------------
def init_params(key, latent_size, item_embed_size, total_items):
    """Weights: xavier_normal_. Biases: PyTorch Linear default U(+-1/sqrt(fan_in)).
    Stored transposed ([in, out]) for the kernel."""
    k1, k2, k3, k4 = jax.random.split(key, 4)

    def xavier_normal(k, fan_in, fan_out):
        std = (2.0 / (fan_in + fan_out)) ** 0.5
        # PyTorch weight is [out, in]; we store [in, out].
        return std * jax.random.normal(k, (fan_in, fan_out), dtype=jnp.float32)

    def bias_init(k, fan_in, fan_out):
        bound = 1.0 / (fan_in ** 0.5)
        return jax.random.uniform(k, (fan_out,), minval=-bound, maxval=bound,
                                  dtype=jnp.float32)

    w1 = xavier_normal(k1, latent_size, item_embed_size)
    b1 = bias_init(k2, latent_size, item_embed_size)
    w2 = xavier_normal(k3, item_embed_size, total_items + 1)
    b2 = bias_init(k4, item_embed_size, total_items + 1)
    return w1, b1, w2, b2


if __name__ == "__main__":
    # Small hyper_params consistent with the module. Note: at these sizes the
    # kernel is overhead-bound; the tiling only pays off at real batch / vocab.
    hyper_params = {
        "latent_size": 32,
        "item_embed_size": 64,
        "total_items": 255,   # linear2 out = total_items + 1 = 256
    }
    batch = 2

    key = jax.random.PRNGKey(0)
    kx, kp = jax.random.split(key)
    x = jax.random.normal(kx, (batch, hyper_params["latent_size"]), dtype=jnp.float32)
    w1, b1, w2, b2 = init_params(
        kp, hyper_params["latent_size"], hyper_params["item_embed_size"],
        hyper_params["total_items"])

    # One-time weight prep (cache this across calls in real use).
    params = prepare_decoder_params(w1, b1, w2, b2)

    logits, out_embed = decoder_forward(x, params)
    jax.block_until_ready((logits, out_embed))

    # Reference check in plain f32 JAX (same semantics as the PyTorch forward).
    # Tolerances relaxed because the kernel uses bf16 matmul inputs with f32
    # accumulation.
    h_ref = x @ w1 + b1
    logits_ref = jnp.tanh(h_ref) @ w2 + b2
    assert logits.shape == (batch, hyper_params["total_items"] + 1)
    assert out_embed.shape == (batch, hyper_params["item_embed_size"])
    assert jnp.allclose(out_embed, h_ref, atol=5e-2, rtol=5e-2)
    assert jnp.allclose(logits, logits_ref, atol=5e-2, rtol=5e-2)

    print("KERNEL_OK")
</pallas_src>

<mosaic_0001>
module attributes {stable_mosaic.version = 11 : i64} {
  func.func @decoder_kernel(%arg0: i32, %arg1: i32, %arg2: memref<16x128xbf16, #tpu.memory_space<vmem>>, %arg3: memref<128x128xbf16, #tpu.memory_space<vmem>>, %arg4: memref<1x128xf32, #tpu.memory_space<vmem>>, %arg5: memref<128x256xbf16, #tpu.memory_space<vmem>>, %arg6: memref<1x256xf32, #tpu.memory_space<vmem>>, %arg7: memref<16x256xf32, #tpu.memory_space<vmem>>, %arg8: memref<16x128xf32, #tpu.memory_space<vmem>>, %arg9: memref<16x128xbf16, #tpu.memory_space<vmem>>) attributes {dimension_semantics = [#tpu.dimension_semantics<parallel>, #tpu.dimension_semantics<arbitrary>], iteration_bounds = array<i64: 1, 1>, scalar_prefetch = 0 : i64, scratch_operands = 1 : i64, tpu.core_type = #tpu.core_type<tc>, window_params = [{transform_indices = @transform_0, window_bounds = array<i64: 16, 128>}, {pipeline_mode = #tpu.pipeline_mode<synchronous>, transform_indices = @transform_1, window_bounds = array<i64: 128, 128>}, {pipeline_mode = #tpu.pipeline_mode<synchronous>, transform_indices = @transform_2, window_bounds = array<i64: 1, 128>}, {transform_indices = @transform_3, window_bounds = array<i64: 128, 256>}, {transform_indices = @transform_4, window_bounds = array<i64: 1, 256>}, {transform_indices = @transform_5, window_bounds = array<i64: 16, 256>}, {transform_indices = @transform_6, window_bounds = array<i64: 16, 128>}]} {
    %c0_i32 = arith.constant 0 : i32
    %0 = arith.cmpi eq, %arg1, %c0_i32 : i32
    %1 = arith.extui %0 : i1 to i32
    %c0_i32_0 = arith.constant 0 : i32
    %2 = arith.cmpi ne, %1, %c0_i32_0 : i32
    scf.if %2 {
      %c0_8 = arith.constant 0 : index
      %c0_9 = arith.constant 0 : index
      %10 = vector.load %arg2[%c0_8, %c0_9] : memref<16x128xbf16, #tpu.memory_space<vmem>>, vector<16x128xbf16>
      %c0_10 = arith.constant 0 : index
      %c0_11 = arith.constant 0 : index
      %11 = vector.load %arg3[%c0_10, %c0_11] : memref<128x128xbf16, #tpu.memory_space<vmem>>, vector<128x128xbf16>
      %cst_12 = arith.constant dense<0.000000e+00> : vector<16x128xf32>
      %12 = tpu.matmul %10, %11, %cst_12 {dimension_numbers = #tpu.dot_dimension_numbers<[1], [0], [0], [1], [0, 0, 1, 1], [], []>} : vector<16x128xbf16>, vector<128x128xbf16>, vector<16x128xf32> -> vector<16x128xf32>
      %c0_13 = arith.constant 0 : index
      %c0_14 = arith.constant 0 : index
      %13 = vector.load %arg4[%c0_13, %c0_14] : memref<1x128xf32, #tpu.memory_space<vmem>>, vector<1x128xf32>
      %14 = vector.broadcast %13 : vector<1x128xf32> to vector<16x128xf32>
      %15 = arith.addf %12, %14 : vector<16x128xf32>
      %c0_15 = arith.constant 0 : index
      %c0_16 = arith.constant 0 : index
      %16 = vector.load %arg8[%c0_15, %c0_16] : memref<16x128xf32, #tpu.memory_space<vmem>>, vector<16x128xf32>
      tpu.vector_store %arg8[%c0_15, %c0_16], %15 {strides = array<i32>} : memref<16x128xf32, #tpu.memory_space<vmem>>, vector<16x128xf32>,
      %17 = math.tanh %15 : vector<16x128xf32>
      %18 = arith.truncf %17 : vector<16x128xf32> to vector<16x128xbf16>
      %c0_17 = arith.constant 0 : index
      %c0_18 = arith.constant 0 : index
      %19 = vector.load %arg9[%c0_17, %c0_18] : memref<16x128xbf16, #tpu.memory_space<vmem>>, vector<16x128xbf16>
      tpu.vector_store %arg9[%c0_17, %c0_18], %18 {strides = array<i32>} : memref<16x128xbf16, #tpu.memory_space<vmem>>, vector<16x128xbf16>,
    } else {
    }
    %c0 = arith.constant 0 : index
    %c0_1 = arith.constant 0 : index
    %3 = vector.load %arg9[%c0, %c0_1] : memref<16x128xbf16, #tpu.memory_space<vmem>>, vector<16x128xbf16>
    %c0_2 = arith.constant 0 : index
    %c0_3 = arith.constant 0 : index
    %4 = vector.load %arg5[%c0_2, %c0_3] : memref<128x256xbf16, #tpu.memory_space<vmem>>, vector<128x256xbf16>
    %cst = arith.constant dense<0.000000e+00> : vector<16x256xf32>
    %5 = tpu.matmul %3, %4, %cst {dimension_numbers = #tpu.dot_dimension_numbers<[1], [0], [0], [1], [0, 0, 1, 1], [], []>} : vector<16x128xbf16>, vector<128x256xbf16>, vector<16x256xf32> -> vector<16x256xf32>
    %c0_4 = arith.constant 0 : index
    %c0_5 = arith.constant 0 : index
    %6 = vector.load %arg6[%c0_4, %c0_5] : memref<1x256xf32, #tpu.memory_space<vmem>>, vector<1x256xf32>
    %7 = vector.broadcast %6 : vector<1x256xf32> to vector<16x256xf32>
    %8 = arith.addf %5, %7 : vector<16x256xf32>
    %c0_6 = arith.constant 0 : index
    %c0_7 = arith.constant 0 : index
    %9 = vector.load %arg7[%c0_6, %c0_7] : memref<16x256xf32, #tpu.memory_space<vmem>>, vector<16x256xf32>
    tpu.vector_store %arg7[%c0_6, %c0_7], %8 {strides = array<i32>} : memref<16x256xf32, #tpu.memory_space<vmem>>, vector<16x256xf32>,
    return
  }
  func.func @transform_0(%arg0: i32, %arg1: i32) -> (i32, i32) {
    %c0_i32 = arith.constant 0 : i32
    %c0_i32_0 = arith.constant 0 : i32
    return %arg0, %c0_i32 : i32, i32
  }
  func.func @transform_1(%arg0: i32, %arg1: i32) -> (i32, i32) {
    %c0_i32 = arith.constant 0 : i32
    %c0_i32_0 = arith.constant 0 : i32
    %c0_i32_1 = arith.constant 0 : i32
    return %c0_i32, %c0_i32_0 : i32, i32
  }
  func.func @transform_2(%arg0: i32, %arg1: i32) -> (i32, i32) {
    %c0_i32 = arith.constant 0 : i32
    %c0_i32_0 = arith.constant 0 : i32
    %c0_i32_1 = arith.constant 0 : i32
    return %c0_i32, %c0_i32_0 : i32, i32
  }
  func.func @transform_3(%arg0: i32, %arg1: i32) -> (i32, i32) {
    %c0_i32 = arith.constant 0 : i32
    %c0_i32_0 = arith.constant 0 : i32
    return %c0_i32, %arg1 : i32, i32
  }
  func.func @transform_4(%arg0: i32, %arg1: i32) -> (i32, i32) {
    %c0_i32 = arith.constant 0 : i32
    %c0_i32_0 = arith.constant 0 : i32
    return %c0_i32, %arg1 : i32, i32
  }
  func.func @transform_5(%arg0: i32, %arg1: i32) -> (i32, i32) {
    %c0_i32 = arith.constant 0 : i32
    return %arg0, %arg1 : i32, i32
  }
  func.func @transform_6(%arg0: i32, %arg1: i32) -> (i32, i32) {
    %c0_i32 = arith.constant 0 : i32
    %c0_i32_0 = arith.constant 0 : i32
    return %arg0, %c0_i32 : i32, i32
  }
}

</mosaic_0001>

<llo_original>
// kernel: tpu_custom_call.1
$region0: #{tpu_custom_call.1}
  #allocation0 [shape = 'u32[]', space=smem, size = 0x4, offset = 0x4, fixed_abs, tag = 'smem constant byte address 0x4 - core index']
  #allocation1 [shape = 'u32[72,128]{1,0:T(1,128)}', space=vmem, size = 0x9000, scoped, tag = 'internal scratch']
  #allocation2 [shape = 'bf16[16,128]{1,0:T(8,128)(2,1)}', space=vmem, size = 0x1000, scoped, tag = 'scratch operand']
  %s0 = inlined_call_operand.hbm [shape: bf16[16,128], index: 0, kind: input, shape index: {}]
  %s1 = inlined_call_operand.hbm [shape: bf16[128,128], index: 1, kind: input, shape index: {}]
  %s2 = inlined_call_operand.vmem [shape: f32[1,128], index: 2, kind: input, shape index: {}]
  %s3 = inlined_call_operand.hbm [shape: bf16[128,256], index: 3, kind: input, shape index: {}]
  %s4 = inlined_call_operand.vmem [shape: f32[1,256], index: 4, kind: input, shape index: {}]
  %s5 = inlined_call_operand.hbm [shape: f32[16,256], index: 5, kind: output, shape index: {0}]
  %s6 = inlined_call_operand.hbm [shape: f32[16,128], index: 6, kind: output, shape index: {1}]
  %7 = xla_tuple %s5, %s6
  %s8 = sld [smem:[#allocation0]]
  $region54: #{tpu_custom_call.1} parent=0
    _
  %s10 = ssub.s32 1, %s8
  %s11 = scalar_select 0, %s10, %s8
  $region1: #{tpu_custom_call.1} parent=0
    #allocation3 [shape = 'u8[4096]{0}', space=vmem, size = 0x1000, scoped, tag = 'input window, operand 0, single buffered']
    #allocation4 [shape = 's32[1]{0}', space=sflag, size = 0x4, scoped, tag = 'scoped memory for tpu_custom_call.1']
    #allocation5 [shape = 's32[1]{0}', space=sflag, size = 0x4, scoped, tag = 'scoped memory for tpu_custom_call.1']
    #allocation6 [shape = 'u8[32768]{0}', space=vmem, size = 0x8000, scoped, tag = 'input window, operand 1, single buffered']
    #allocation7 [shape = 's32[1]{0}', space=sflag, size = 0x4, scoped, tag = 'scoped memory for tpu_custom_call.1']
    #allocation8 [shape = 'u8[65536]{0}', space=vmem, size = 0x10000, scoped, tag = 'input window, operand 3, single buffered']
    #allocation9 [shape = 'u8[16384]{0}', space=vmem, size = 0x4000, scoped, tag = 'output window, operand 0, single buffered']
    #allocation10 [shape = 'u8[8192]{0}', space=vmem, size = 0x2000, scoped, tag = 'output window, operand 1, single buffered']
    #allocation11 [shape = 's32[1]{0}', space=sflag, size = 0x4, scoped, tag = 'scoped memory for tpu_custom_call.1']
    %12 = vsyncpa [#allocation4], 0
    %13 = vsyncpa [#allocation7], 0
    %14 = vsyncpa [#allocation5], 0
    %15 = vsyncpa [#allocation11], 0
    // Predicated region
    $region2: #{tpu_custom_call.1} parent=1 // pred_check
      _
    $region3: #{tpu_custom_call.1} parent=1 // pred_check_branch
      %17 = sbr.rel (0) target = $region5
    $region4: #{tpu_custom_call.1} parent=1 // pred_region
      %19 = vsyncadd [#allocation4], 0
      %s20 = sshll.u32 %s0, 4
      %s21 = int_to_ptr.hbm [resolvable:$true] %s20
      %s22 = sshll.u32 [#allocation3], 4
      %s23 = int_to_ptr.vmem [resolvable:$true] %s22
      %28 = dma.hbm_to_vmem [thread:$0]  %s21, 128, %s23, [#allocation4], 64, 64, 4
    $region5: #{tpu_custom_call.1} parent=1 // pred_fallthru
      _
    // Predicated region
    $region6: #{tpu_custom_call.1} parent=1 // pred_check
      _
    $region7: #{tpu_custom_call.1} parent=1 // pred_check_branch
      %30 = sbr.rel (0) target = $region9
    $region8: #{tpu_custom_call.1} parent=1 // pred_region
      %32 = vsyncadd [#allocation7], 0
      %s33 = sshll.u32 %s1, 4
      %s34 = int_to_ptr.hbm [resolvable:$true] %s33
      %s35 = sshll.u32 [#allocation6], 4
      %s36 = int_to_ptr.vmem [resolvable:$true] %s35
      %41 = dma.hbm_to_vmem [thread:$0]  %s34, 1024, %s36, [#allocation7], 64, 64, 4
    $region9: #{tpu_custom_call.1} parent=1 // pred_fallthru
      _
    // Predicated region
    $region10: #{tpu_custom_call.1} parent=1 // pred_check
      _
    $region11: #{tpu_custom_call.1} parent=1 // pred_check_branch
      %43 = sbr.rel (0) target = $region13
    $region12: #{tpu_custom_call.1} parent=1 // pred_region
      _
    $region13: #{tpu_custom_call.1} parent=1 // pred_fallthru
      _
    // Predicated region
    $region14: #{tpu_custom_call.1} parent=1 // pred_check
      _
    $region15: #{tpu_custom_call.1} parent=1 // pred_check_branch
      %45 = sbr.rel (0) target = $region17
    $region16: #{tpu_custom_call.1} parent=1 // pred_region
      %47 = vsyncadd [#allocation7], 0
      %s48 = sshll.u32 %s3, 4
      %s49 = int_to_ptr.hbm [resolvable:$true] %s48
      %s50 = sshll.u32 [#allocation8], 4
      %s51 = int_to_ptr.vmem [resolvable:$true] %s50
      %56 = dma.hbm_to_vmem [thread:$0]  %s49, 2048, %s51, [#allocation7], 128, 128, 8
    $region17: #{tpu_custom_call.1} parent=1 // pred_fallthru
      _
    // Predicated region
    $region18: #{tpu_custom_call.1} parent=1 // pred_check
      _
    $region19: #{tpu_custom_call.1} parent=1 // pred_check_branch
      %58 = sbr.rel (0) target = $region21
    $region20: #{tpu_custom_call.1} parent=1 // pred_region
      _
    $region21: #{tpu_custom_call.1} parent=1 // pred_fallthru
      _
    // Predicated region
    $region22: #{tpu_custom_call.1} parent=1 // pred_check
      _
    $region23: #{tpu_custom_call.1} parent=1 // pred_check_branch
      %60 = sbr.rel (0) target = $region25
    $region24: #{tpu_custom_call.1} parent=1 // pred_region
      %62 = dma.done [#allocation4], 128
    $region25: #{tpu_custom_call.1} parent=1 // pred_fallthru
      _
    // Predicated region
    $region26: #{tpu_custom_call.1} parent=1 // pred_check
      _
    $region27: #{tpu_custom_call.1} parent=1 // pred_check_branch
      %64 = sbr.rel (0) target = $region29
    $region28: #{tpu_custom_call.1} parent=1 // pred_region
      %66 = dma.done [#allocation7], 1024
    $region29: #{tpu_custom_call.1} parent=1 // pred_fallthru
      _
    // Predicated region
    $region30: #{tpu_custom_call.1} parent=1 // pred_check
      _
    $region31: #{tpu_custom_call.1} parent=1 // pred_check_branch
      %68 = sbr.rel (0) target = $region33
    $region32: #{tpu_custom_call.1} parent=1 // pred_region
      %70 = dma.done [#allocation7], 2048
    $region33: #{tpu_custom_call.1} parent=1 // pred_fallthru
      _
    %p71 = scmp.eq.s32.totalorder 0, 0
    // Predicated region
    $region34: #{tpu_custom_call.1} parent=1 // pred_check
      %p72 = pneg %p71
    $region35: #{tpu_custom_call.1} parent=1 // pred_check_branch
      %74 = sbr.rel (%p72) target = $region37
    $region36: #{tpu_custom_call.1} parent=1 // pred_region
      %v75 = vld [vmem:[#allocation3] sm:$0xf]
      %v76 = vld [vmem:[#allocation3 + $0x4] sm:$0xf]
      %v77 = vld [vmem:[#allocation6] sm:$0xf]
      %v78 = vld [vmem:[#allocation6 + $0x4] sm:$0xf]
      %v79 = vld [vmem:[#allocation6 + $0x8] sm:$0xf]
      %v80 = vld [vmem:[#allocation6 + $0xc] sm:$0xf]
      %v81 = vld [vmem:[#allocation6 + $0x10] sm:$0xf]
      %v82 = vld [vmem:[#allocation6 + $0x14] sm:$0xf]
      %v83 = vld [vmem:[#allocation6 + $0x18] sm:$0xf]
      %v84 = vld [vmem:[#allocation6 + $0x1c] sm:$0xf]
      %v85 = vld [vmem:[#allocation6 + $0x20] sm:$0xf]
      %v86 = vld [vmem:[#allocation6 + $0x24] sm:$0xf]
      %v87 = vld [vmem:[#allocation6 + $0x28] sm:$0xf]
      %v88 = vld [vmem:[#allocation6 + $0x2c] sm:$0xf]
      %v89 = vld [vmem:[#allocation6 + $0x30] sm:$0xf]
      %v90 = vld [vmem:[#allocation6 + $0x34] sm:$0xf]
      %v91 = vld [vmem:[#allocation6 + $0x38] sm:$0xf]
      %v92 = vld [vmem:[#allocation6 + $0x3c] sm:$0xf]
      %v93 = vld [vmem:[%s2] sm:$0x1]
      %v95 = vperm.slane %v93, 0
      %v99 = vunpack.c.l.b16 %v75
      %v100 = vunpack.c.l.b16 %v76
      %v101 = vpack.c.b16 %v100, %v99
      %v119 = vunpack.c.l.b16 %v77
      %v120 = vunpack.c.l.b16 %v78
      %v121 = vunpack.c.l.b16 %v79
      %v122 = vunpack.c.l.b16 %v80
      %v123 = vunpack.c.l.b16 %v81
      %v124 = vunpack.c.l.b16 %v82
      %v125 = vunpack.c.l.b16 %v83
      %v126 = vunpack.c.l.b16 %v84
      %v127 = vunpack.c.l.b16 %v85
      %v128 = vunpack.c.l.b16 %v86
      %v129 = vunpack.c.l.b16 %v87
      %v130 = vunpack.c.l.b16 %v88
      %v131 = vunpack.c.l.b16 %v89
      %v132 = vunpack.c.l.b16 %v90
      %v133 = vunpack.c.l.b16 %v91
      %v134 = vunpack.c.l.b16 %v92
      %v135 = vpack.c.b16 %v120, %v119
      %v136 = vpack.c.b16 %v122, %v121
      %v137 = vpack.c.b16 %v124, %v123
      %v138 = vpack.c.b16 %v126, %v125
      %v139 = vpack.c.b16 %v128, %v127
      %v140 = vpack.c.b16 %v130, %v129
      %v141 = vpack.c.b16 %v132, %v131
      %v142 = vpack.c.b16 %v134, %v133
      %151 = vmatpush.bf16.msra.mxu0 %v142
      %152 = vmatpush.bf16.msra.mxu0 %v141
      %153 = vmatpush.bf16.msra.mxu0 %v140
      %154 = vmatpush.bf16.msra.mxu0 %v139
      %155 = vmatpush.bf16.msra.mxu0 %v138
      %156 = vmatpush.bf16.msra.mxu0 %v137
      %157 = vmatpush.bf16.msra.mxu0 %v136
      %158 = vmatpush.bf16.msra.mxu0 %v135
      %159 = vmatmul.bf16.gmra.mxu0 %v101
      %v160 = vpop.f32.mrf.mxu0
      %v161 = vadd.f32 %v95, %v160
      %v162 = vpop.f32.mrf.mxu0
      %v163 = vadd.f32 %v95, %v162
      %164 = vdwg.mxu0
      %165 = vst [vmem:[#allocation10] sm:$0xff] %v161
      %166 = vst [vmem:[#allocation10 + $0x8] sm:$0xff] %v163
      %v167 = vtanh.pop %v161
      %v168 = vtanh.pop %v163
      %v169 = vpack.c.bf16 %v167, %v167
      %v170 = vpack.c.bf16 %v168, %v168
      %171 = vst [vmem:[#allocation2] sm:$0xf] %v169
      %172 = vst [vmem:[#allocation2 + $0x4] sm:$0xf] %v170
    $region37: #{tpu_custom_call.1} parent=1 // pred_fallthru
      _
    %v173 = vld [vmem:[#allocation2] sm:$0xf]
    %v174 = vld [vmem:[#allocation2 + $0x4] sm:$0xf]
    %v175 = vld [vmem:[#allocation8] sm:$0xff]
    %v176 = vld [vmem:[#allocation8 + $0x8] sm:$0xff]
    %v177 = vld [vmem:[#allocation8 + $0x10] sm:$0xff]
    %v178 = vld [vmem:[#allocation8 + $0x18] sm:$0xff]
    %v179 = vld [vmem:[#allocation8 + $0x20] sm:$0xff]
    %v180 = vld [vmem:[#allocation8 + $0x28] sm:$0xff]
    %v181 = vld [vmem:[#allocation8 + $0x30] sm:$0xff]
    %v182 = vld [vmem:[#allocation8 + $0x38] sm:$0xff]
    %v183 = vld [vmem:[#allocation8 + $0x40] sm:$0xff]
    %v184 = vld [vmem:[#allocation8 + $0x48] sm:$0xff]
    %v185 = vld [vmem:[#allocation8 + $0x50] sm:$0xff]
    %v186 = vld [vmem:[#allocation8 + $0x58] sm:$0xff]
    %v187 = vld [vmem:[#allocation8 + $0x60] sm:$0xff]
    %v188 = vld [vmem:[#allocation8 + $0x68] sm:$0xff]
    %v189 = vld [vmem:[#allocation8 + $0x70] sm:$0xff]
    %v190 = vld [vmem:[#allocation8 + $0x78] sm:$0xff]
    %v191 = vld [vmem:[%s4] sm:$0x3]
    %v193 = vperm.slane %v191, 0
    %v194 = vperm.slane %v191, 1
    %v199 = vunpack.c.l.b16 %v173
    %v200 = vunpack.c.l.b16 %v174
    %v201 = vpack.c.b16 %v200, %v199
    %v219 = vunpack.c.l.b16 %v175
    %v220 = vunpack.c.h.b16 %v175
    %v221 = vunpack.c.l.b16 %v176
    %v222 = vunpack.c.h.b16 %v176
    %v223 = vunpack.c.l.b16 %v177
    %v224 = vunpack.c.h.b16 %v177
    %v225 = vunpack.c.l.b16 %v178
    %v226 = vunpack.c.h.b16 %v178
    %v227 = vunpack.c.l.b16 %v179
    %v228 = vunpack.c.h.b16 %v179
    %v229 = vunpack.c.l.b16 %v180
    %v230 = vunpack.c.h.b16 %v180
    %v231 = vunpack.c.l.b16 %v181
    %v232 = vunpack.c.h.b16 %v181
    %v233 = vunpack.c.l.b16 %v182
    %v234 = vunpack.c.h.b16 %v182
    %v235 = vunpack.c.l.b16 %v183
    %v236 = vunpack.c.h.b16 %v183
    %v237 = vunpack.c.l.b16 %v184
    %v238 = vunpack.c.h.b16 %v184
    %v239 = vunpack.c.l.b16 %v185
    %v240 = vunpack.c.h.b16 %v185
    %v241 = vunpack.c.l.b16 %v186
    %v242 = vunpack.c.h.b16 %v186
    %v243 = vunpack.c.l.b16 %v187
    %v244 = vunpack.c.h.b16 %v187
    %v245 = vunpack.c.l.b16 %v188
    %v246 = vunpack.c.h.b16 %v188
    %v247 = vunpack.c.l.b16 %v189
    %v248 = vunpack.c.h.b16 %v189
    %v249 = vunpack.c.l.b16 %v190
    %v250 = vunpack.c.h.b16 %v190
    %v251 = vpack.c.b16 %v221, %v219
    %v252 = vpack.c.b16 %v222, %v220
    %v253 = vpack.c.b16 %v225, %v223
    %v254 = vpack.c.b16 %v226, %v224
    %v255 = vpack.c.b16 %v229, %v227
    %v256 = vpack.c.b16 %v230, %v228
    %v257 = vpack.c.b16 %v233, %v231
    %v258 = vpack.c.b16 %v234, %v232
    %v259 = vpack.c.b16 %v237, %v235
    %v260 = vpack.c.b16 %v238, %v236
    %v261 = vpack.c.b16 %v241, %v239
    %v262 = vpack.c.b16 %v242, %v240
    %v263 = vpack.c.b16 %v245, %v243
    %v264 = vpack.c.b16 %v246, %v244
    %v265 = vpack.c.b16 %v249, %v247
    %v266 = vpack.c.b16 %v250, %v248
    %283 = vmatpush.bf16.msra.mxu0 %v265
    %284 = vmatpush.bf16.msra.mxu0 %v263
    %285 = vmatpush.bf16.msra.mxu0 %v261
    %286 = vmatpush.bf16.msra.mxu0 %v259
    %287 = vmatpush.bf16.msra.mxu0 %v257
    %288 = vmatpush.bf16.msra.mxu0 %v255
    %289 = vmatpush.bf16.msra.mxu0 %v253
    %290 = vmatpush.bf16.msra.mxu0 %v251
    %291 = vmatmul.bf16.gmra.mxu0 %v201
    %v292 = vpop.f32.mrf.mxu0
    %v293 = vadd.f32 %v193, %v292
    %v294 = vpop.f32.mrf.mxu0
    %v295 = vadd.f32 %v193, %v294
    %296 = vdwg.mxu0
    %297 = vmatpush.bf16.msra.mxu0 %v266
    %298 = vmatpush.bf16.msra.mxu0 %v264
    %299 = vmatpush.bf16.msra.mxu0 %v262
    %300 = vmatpush.bf16.msra.mxu0 %v260
    %301 = vmatpush.bf16.msra.mxu0 %v258
    %302 = vmatpush.bf16.msra.mxu0 %v256
    %303 = vmatpush.bf16.msra.mxu0 %v254
    %304 = vmatpush.bf16.msra.mxu0 %v252
    %305 = vmatmul.bf16.gmra.mxu0 %v201
    %v306 = vpop.f32.mrf.mxu0
    %v307 = vadd.f32 %v194, %v306
    %v308 = vpop.f32.mrf.mxu0
    %v309 = vadd.f32 %v194, %v308
    %310 = vdwg.mxu0
    %311 = vst [vmem:[#allocation9] sm:$0xff] %v293
    %312 = vst [vmem:[#allocation9 + $0x8] sm:$0xff] %v307
    %313 = vst [vmem:[#allocation9 + $0x10] sm:$0xff] %v295
    %314 = vst [vmem:[#allocation9 + $0x18] sm:$0xff] %v309
    // Predicated region
    $region38: #{tpu_custom_call.1} parent=1 // pred_check
      _
    $region39: #{tpu_custom_call.1} parent=1 // pred_check_branch
      %316 = sbr.rel (0) target = $region41
    $region40: #{tpu_custom_call.1} parent=1 // pred_region
      %318 = vsyncadd [#allocation5], 0
      %s319 = sshll.u32 [#allocation9], 4
      %s320 = int_to_ptr.vmem [resolvable:$true] %s319
      %s321 = sshll.u32 %s5, 4
      %s322 = int_to_ptr.hbm [resolvable:$true] %s321
      %327 = dma.vmem_to_hbm [thread:$0]  %s320, 512, %s322, [#allocation5], 256, 256, 16
    $region41: #{tpu_custom_call.1} parent=1 // pred_fallthru
      _
    // Predicated region
    $region42: #{tpu_custom_call.1} parent=1 // pred_check
      _
    $region43: #{tpu_custom_call.1} parent=1 // pred_check_branch
      %329 = sbr.rel (0) target = $region45
    $region44: #{tpu_custom_call.1} parent=1 // pred_region
      %331 = vsyncadd [#allocation11], 0
      %s332 = sshll.u32 [#allocation10], 4
      %s333 = int_to_ptr.vmem [resolvable:$true] %s332
      %s334 = sshll.u32 %s6, 4
      %s335 = int_to_ptr.hbm [resolvable:$true] %s334
      %340 = dma.vmem_to_hbm [thread:$0]  %s333, 256, %s335, [#allocation11], 128, 128, 8
    $region45: #{tpu_custom_call.1} parent=1 // pred_fallthru
      _
    // Predicated region
    $region46: #{tpu_custom_call.1} parent=1 // pred_check
      _
    $region47: #{tpu_custom_call.1} parent=1 // pred_check_branch
      %342 = sbr.rel (0) target = $region49
    $region48: #{tpu_custom_call.1} parent=1 // pred_region
      %344 = dma.done [#allocation5], 512
    $region49: #{tpu_custom_call.1} parent=1 // pred_fallthru
      _
    // Predicated region
    $region50: #{tpu_custom_call.1} parent=1 // pred_check
      _
    $region51: #{tpu_custom_call.1} parent=1 // pred_check_branch
      %346 = sbr.rel (0) target = $region53
    $region52: #{tpu_custom_call.1} parent=1 // pred_region
      %348 = dma.done [#allocation11], 256
    $region53: #{tpu_custom_call.1} parent=1 // pred_fallthru
      _
    %349 = vsyncpa [#allocation4], 1
    %350 = vsyncpa [#allocation7], 1
    %351 = vsyncpa [#allocation5], 1
    %352 = vsyncpa [#allocation11], 1

</llo_original>
